<compile_context>
chip_gen: v5e
topology: v5e:2x2
jax: 0.10.0
libtpu: 0.0.40
codegen_flags: <defaults>
</compile_context>

<pallas_src>
import math
import functools

import jax
import jax.numpy as jnp
import numpy as np
from jax.experimental import pallas as pl
from jax.experimental.pallas import tpu as pltpu


def _mha_kernel(x_ref, wqkv_ref, bqkv_ref, bias_ref, wf_ref, bf_ref, o_ref,
                *, H, hs, scale):
    """One grid cell = one (batch*traj) row: fused QKV + H-head attention +
    fused (out_proj ∘ proj) in a single pass."""
    E = H * hs
    x = x_ref[0]                                                      # (S, E)

    # One fat projection for all heads and q/k/v at once: (S, E) @ (E, 3E).
    qkv = (jnp.dot(x, wqkv_ref[...], preferred_element_type=jnp.float32)
           + bqkv_ref[...])                                           # (S, 3E)

    bias = bias_ref[...]                                              # (S, S) additive

    heads = []
    for h in range(H):                                                # H is small, unrolled
        qh = qkv[:, h * hs:(h + 1) * hs]                              # (S, hs)
        kh = qkv[:, E + h * hs: E + (h + 1) * hs]
        vh = qkv[:, 2 * E + h * hs: 2 * E + (h + 1) * hs]

        s = jnp.dot(qh, kh.T, preferred_element_type=jnp.float32) * scale + bias
        # numerically-stable softmax over last axis
        s = s - jnp.max(s, axis=-1, keepdims=True)
        p = jnp.exp(s)
        # exact reciprocal keeps bit-level parity with the f32 reference;
        # pl.reciprocal(..., approx=True) would move the divide to the EUP.
        p = p * pl.reciprocal(jnp.sum(p, axis=-1, keepdims=True), approx=False)
        # TODO(synk): nn.Dropout on attention weights is identity here (eval mode).
        heads.append(jnp.dot(p, vh, preferred_element_type=jnp.float32))

    attn = jnp.concatenate(heads, axis=-1)                            # (S, E)

    # Fused (blockdiag(wo) @ wproj) projection straight to the final output.
    out = (jnp.dot(attn, wf_ref[...], preferred_element_type=jnp.float32)
           + bf_ref[...])                                             # (S, E)
    o_ref[0] = out.astype(o_ref.dtype)


def multi_head_attention(x, mask, params):
    """x: (B, T, S, E) float32; mask: (S, S) int/bool (nonzero == masked)."""
    B, T, S, E = x.shape
    H, _, hs = params["wq"].shape
    N = B * T
    xf = x.reshape(N, S, E)
    scale = 1.0 / math.sqrt(E)          # PyTorch divides by sqrt(x.shape[-1])

    # ---- one-time host-side weight folding (tiny) -------------------------
    def flat_w(w):                       # (H, E, hs) -> (E, H*hs)
        return jnp.transpose(w, (1, 0, 2)).reshape(E, H * hs)

    def flat_b(b):                       # (H, 1, hs) -> (H*hs,)
        return b.reshape(H * hs)

    wqkv = jnp.concatenate(
        [flat_w(params["wq"]), flat_w(params["wk"]), flat_w(params["wv"])],
        axis=1)                                                   # (E, 3E)
    bqkv = jnp.concatenate(
        [flat_b(params["bq"]), flat_b(params["bk"]), flat_b(params["bv"])]
    )[None, :]                                                    # (1, 3E)

    # blockdiag(wo_0..wo_{H-1}) folded into wproj
    w_bd = jnp.zeros((E, E), params["wo"].dtype)
    for h in range(H):
        w_bd = w_bd.at[h * hs:(h + 1) * hs, h * hs:(h + 1) * hs].set(params["wo"][h])
    w_fused = w_bd @ params["wproj"]                              # (E, E)
    b_fused = flat_b(params["bo"])[None, :] @ params["wproj"] + params["bproj"]  # (1, E)

    # additive mask bias: masked positions get -1e7 (exp underflows to 0,
    # identical to masked_fill after the stable-softmax max-subtraction)
    bias = mask.astype(jnp.float32) * jnp.float32(-10000000.0)    # (S, S)

    out = pl.pallas_call(
        functools.partial(_mha_kernel, H=H, hs=hs, scale=scale),
        out_shape=jax.ShapeDtypeStruct((N, S, E), x.dtype),
        grid=(N,),
        in_specs=[
            pl.BlockSpec((1, S, E), lambda n: (n, 0, 0)),     # x row
            pl.BlockSpec((E, 3 * E), lambda n: (0, 0)),       # stacked QKV weight (resident)
            pl.BlockSpec((1, 3 * E), lambda n: (0, 0)),       # stacked QKV bias   (resident)
            pl.BlockSpec((S, S), lambda n: (0, 0)),           # additive mask bias (resident)
            pl.BlockSpec((E, E), lambda n: (0, 0)),           # fused out_proj∘proj weight
            pl.BlockSpec((1, E), lambda n: (0, 0)),           # fused bias
        ],
        out_specs=pl.BlockSpec((1, S, E), lambda n: (n, 0, 0)),
        compiler_params=pltpu.CompilerParams(
            dimension_semantics=("parallel",)),
    )(xf, wqkv, bqkv, bias, w_fused, b_fused)

    # TODO(synk): final nn.Dropout is identity (eval mode).
    return out.reshape(B, T, S, E)


def reference_jax(x, mask, params):
    """Pure-JAX reference mirroring the PyTorch forward (eval mode), using the
    original un-fused parameters (independent check of the folding algebra)."""
    B, T, S, E = x.shape
    H = params["wq"].shape[0]
    mask_b = mask.astype(bool)
    outs = []
    for h in range(H):
        q = x @ params["wq"][h] + params["bq"][h, 0]
        k = x @ params["wk"][h] + params["bk"][h, 0]
        v = x @ params["wv"][h] + params["bv"][h, 0]
        w = (q @ jnp.swapaxes(k, -1, -2)) / math.sqrt(E)
        w = jnp.where(mask_b, jnp.float32(-10000000.0), w)
        w = jax.nn.softmax(w, axis=-1)
        o = w @ v
        o = o @ params["wo"][h] + params["bo"][h, 0]
        outs.append(o)
    cat = jnp.concatenate(outs, axis=-1)
    return cat @ params["wproj"] + params["bproj"][0]


if __name__ == "__main__":
    B, T, S, E, H = 2, 3, 8, 32, 4     # batch, trajectory_num, seq, n_embd, heads
    hs = E // H                        # head_size = 8; H * hs == n_embd

    key = jax.random.PRNGKey(0)
    keys = jax.random.split(key, 12)

    def init(k, shape, s=0.1):
        return jax.random.normal(k, shape, jnp.float32) * s

    params = dict(
        wq=init(keys[0], (H, E, hs)),  bq=init(keys[1], (H, 1, hs)),
        wk=init(keys[2], (H, E, hs)),  bk=init(keys[3], (H, 1, hs)),
        wv=init(keys[4], (H, E, hs)),  bv=init(keys[5], (H, 1, hs)),
        wo=init(keys[6], (H, hs, hs)), bo=init(keys[7], (H, 1, hs)),
        wproj=init(keys[8], (E, E)),   bproj=init(keys[9], (1, E)),
    )

    x = jax.random.normal(keys[10], (B, T, S, E), jnp.float32)
    # causal mask broadcast over (B, T, S, S); nonzero => fill with -1e7
    mask = jnp.triu(jnp.ones((S, S), jnp.int32), k=1)

    out = multi_head_attention(x, mask, params)
    out = jax.block_until_ready(out)

    ref = reference_jax(x, mask, params)
    np.testing.assert_allclose(np.asarray(out), np.asarray(ref),
                               rtol=1e-4, atol=1e-4)
    print("KERNEL_OK")
</pallas_src>

<mosaic_0001>
module attributes {stable_mosaic.version = 11 : i64} {
  func.func @_mha_kernel(%arg0: i32, %arg1: memref<1x8x32xf32, #tpu.memory_space<vmem>>, %arg2: memref<32x96xf32, #tpu.memory_space<vmem>>, %arg3: memref<1x96xf32, #tpu.memory_space<vmem>>, %arg4: memref<8x8xf32, #tpu.memory_space<vmem>>, %arg5: memref<32x32xf32, #tpu.memory_space<vmem>>, %arg6: memref<1x32xf32, #tpu.memory_space<vmem>>, %arg7: memref<1x8x32xf32, #tpu.memory_space<vmem>>) attributes {dimension_semantics = [#tpu.dimension_semantics<parallel>], iteration_bounds = array<i64: 6>, scalar_prefetch = 0 : i64, scratch_operands = 0 : i64, tpu.core_type = #tpu.core_type<tc>, window_params = [{transform_indices = @transform_0, window_bounds = array<i64: 1, 8, 32>}, {pipeline_mode = #tpu.pipeline_mode<synchronous>, transform_indices = @transform_1, window_bounds = array<i64: 32, 96>}, {pipeline_mode = #tpu.pipeline_mode<synchronous>, transform_indices = @transform_2, window_bounds = array<i64: 1, 96>}, {pipeline_mode = #tpu.pipeline_mode<synchronous>, transform_indices = @transform_3, window_bounds = array<i64: 8, 8>}, {pipeline_mode = #tpu.pipeline_mode<synchronous>, transform_indices = @transform_4, window_bounds = array<i64: 32, 32>}, {pipeline_mode = #tpu.pipeline_mode<synchronous>, transform_indices = @transform_5, window_bounds = array<i64: 1, 32>}, {transform_indices = @transform_6, window_bounds = array<i64: 1, 8, 32>}]} {
    %c0 = arith.constant 0 : index
    %c0_0 = arith.constant 0 : index
    %c0_1 = arith.constant 0 : index
    %0 = vector.load %arg1[%c0, %c0_0, %c0_1] : memref<1x8x32xf32, #tpu.memory_space<vmem>>, vector<1x8x32xf32>
    %1 = vector.shape_cast %0 : vector<1x8x32xf32> to vector<8x32xf32>
    %c0_2 = arith.constant 0 : index
    %c0_3 = arith.constant 0 : index
    %2 = vector.load %arg2[%c0_2, %c0_3] : memref<32x96xf32, #tpu.memory_space<vmem>>, vector<32x96xf32>
    %cst = arith.constant dense<0.000000e+00> : vector<8x96xf32>
    %3 = tpu.matmul %1, %2, %cst {dimension_numbers = #tpu.dot_dimension_numbers<[1], [0], [0], [1], [0, 0, 1, 1], [], []>} : vector<8x32xf32>, vector<32x96xf32>, vector<8x96xf32> -> vector<8x96xf32>
    %c0_4 = arith.constant 0 : index
    %c0_5 = arith.constant 0 : index
    %4 = vector.load %arg3[%c0_4, %c0_5] : memref<1x96xf32, #tpu.memory_space<vmem>>, vector<1x96xf32>
    %5 = vector.broadcast %4 : vector<1x96xf32> to vector<8x96xf32>
    %6 = arith.addf %3, %5 : vector<8x96xf32>
    %c0_6 = arith.constant 0 : index
    %c0_7 = arith.constant 0 : index
    %7 = vector.load %arg4[%c0_6, %c0_7] : memref<8x8xf32, #tpu.memory_space<vmem>>, vector<8x8xf32>
    %8 = vector.extract_strided_slice %6 {offsets = [0, 0], sizes = [8, 8], strides = [1, 1]} : vector<8x96xf32> to vector<8x8xf32>
    %9 = vector.extract_strided_slice %6 {offsets = [0, 32], sizes = [8, 8], strides = [1, 1]} : vector<8x96xf32> to vector<8x8xf32>
    %10 = vector.extract_strided_slice %6 {offsets = [0, 64], sizes = [8, 8], strides = [1, 1]} : vector<8x96xf32> to vector<8x8xf32>
    %11 = tpu.transpose %9, [1, 0] : vector<8x8xf32> -> vector<8x8xf32>
    %cst_8 = arith.constant dense<0.000000e+00> : vector<8x8xf32>
    %12 = tpu.matmul %8, %11, %cst_8 {dimension_numbers = #tpu.dot_dimension_numbers<[1], [0], [0], [1], [0, 0, 1, 1], [], []>} : vector<8x8xf32>, vector<8x8xf32>, vector<8x8xf32> -> vector<8x8xf32>
    %cst_9 = arith.constant 0.176776692 : f32
    %13 = vector.broadcast %cst_9 : f32 to vector<8x8xf32>
    %14 = arith.mulf %12, %13 : vector<8x8xf32>
    %15 = arith.addf %14, %7 : vector<8x8xf32>
    %cst_10 = arith.constant dense<0xFF800000> : vector<8xf32>
    %16 = vector.multi_reduction <maximumf>, %15, %cst_10 [1] : vector<8x8xf32> to vector<8xf32>
    %17 = vector.shape_cast %16 : vector<8xf32> to vector<8x1xf32>
    %18 = vector.broadcast %17 : vector<8x1xf32> to vector<8x8xf32>
    %19 = arith.subf %15, %18 : vector<8x8xf32>
    %20 = math.exp %19 : vector<8x8xf32>
    %cst_11 = arith.constant dense<0.000000e+00> : vector<8xf32>
    %21 = vector.multi_reduction <add>, %20, %cst_11 [1] : vector<8x8xf32> to vector<8xf32>
    %22 = vector.shape_cast %21 : vector<8xf32> to vector<8x1xf32>
    %23 = tpu.reciprocal %22 : vector<8x1xf32> -> vector<8x1xf32>
    %24 = vector.broadcast %23 : vector<8x1xf32> to vector<8x8xf32>
    %25 = arith.mulf %20, %24 : vector<8x8xf32>
    %cst_12 = arith.constant dense<0.000000e+00> : vector<8x8xf32>
    %26 = tpu.matmul %25, %10, %cst_12 {dimension_numbers = #tpu.dot_dimension_numbers<[1], [0], [0], [1], [0, 0, 1, 1], [], []>} : vector<8x8xf32>, vector<8x8xf32>, vector<8x8xf32> -> vector<8x8xf32>
    %27 = vector.extract_strided_slice %6 {offsets = [0, 8], sizes = [8, 8], strides = [1, 1]} : vector<8x96xf32> to vector<8x8xf32>
    %28 = vector.extract_strided_slice %6 {offsets = [0, 40], sizes = [8, 8], strides = [1, 1]} : vector<8x96xf32> to vector<8x8xf32>
    %29 = vector.extract_strided_slice %6 {offsets = [0, 72], sizes = [8, 8], strides = [1, 1]} : vector<8x96xf32> to vector<8x8xf32>
    %30 = tpu.transpose %28, [1, 0] : vector<8x8xf32> -> vector<8x8xf32>
    %cst_13 = arith.constant dense<0.000000e+00> : vector<8x8xf32>
    %31 = tpu.matmul %27, %30, %cst_13 {dimension_numbers = #tpu.dot_dimension_numbers<[1], [0], [0], [1], [0, 0, 1, 1], [], []>} : vector<8x8xf32>, vector<8x8xf32>, vector<8x8xf32> -> vector<8x8xf32>
    %cst_14 = arith.constant 0.176776692 : f32
    %32 = vector.broadcast %cst_14 : f32 to vector<8x8xf32>
    %33 = arith.mulf %31, %32 : vector<8x8xf32>
    %34 = arith.addf %33, %7 : vector<8x8xf32>
    %cst_15 = arith.constant dense<0xFF800000> : vector<8xf32>
    %35 = vector.multi_reduction <maximumf>, %34, %cst_15 [1] : vector<8x8xf32> to vector<8xf32>
    %36 = vector.shape_cast %35 : vector<8xf32> to vector<8x1xf32>
    %37 = vector.broadcast %36 : vector<8x1xf32> to vector<8x8xf32>
    %38 = arith.subf %34, %37 : vector<8x8xf32>
    %39 = math.exp %38 : vector<8x8xf32>
    %cst_16 = arith.constant dense<0.000000e+00> : vector<8xf32>
    %40 = vector.multi_reduction <add>, %39, %cst_16 [1] : vector<8x8xf32> to vector<8xf32>
    %41 = vector.shape_cast %40 : vector<8xf32> to vector<8x1xf32>
    %42 = tpu.reciprocal %41 : vector<8x1xf32> -> vector<8x1xf32>
    %43 = vector.broadcast %42 : vector<8x1xf32> to vector<8x8xf32>
    %44 = arith.mulf %39, %43 : vector<8x8xf32>
    %cst_17 = arith.constant dense<0.000000e+00> : vector<8x8xf32>
    %45 = tpu.matmul %44, %29, %cst_17 {dimension_numbers = #tpu.dot_dimension_numbers<[1], [0], [0], [1], [0, 0, 1, 1], [], []>} : vector<8x8xf32>, vector<8x8xf32>, vector<8x8xf32> -> vector<8x8xf32>
    %46 = vector.extract_strided_slice %6 {offsets = [0, 16], sizes = [8, 8], strides = [1, 1]} : vector<8x96xf32> to vector<8x8xf32>
    %47 = vector.extract_strided_slice %6 {offsets = [0, 48], sizes = [8, 8], strides = [1, 1]} : vector<8x96xf32> to vector<8x8xf32>
    %48 = vector.extract_strided_slice %6 {offsets = [0, 80], sizes = [8, 8], strides = [1, 1]} : vector<8x96xf32> to vector<8x8xf32>
    %49 = tpu.transpose %47, [1, 0] : vector<8x8xf32> -> vector<8x8xf32>
    %cst_18 = arith.constant dense<0.000000e+00> : vector<8x8xf32>
    %50 = tpu.matmul %46, %49, %cst_18 {dimension_numbers = #tpu.dot_dimension_numbers<[1], [0], [0], [1], [0, 0, 1, 1], [], []>} : vector<8x8xf32>, vector<8x8xf32>, vector<8x8xf32> -> vector<8x8xf32>
    %cst_19 = arith.constant 0.176776692 : f32
    %51 = vector.broadcast %cst_19 : f32 to vector<8x8xf32>
    %52 = arith.mulf %50, %51 : vector<8x8xf32>
    %53 = arith.addf %52, %7 : vector<8x8xf32>
    %cst_20 = arith.constant dense<0xFF800000> : vector<8xf32>
    %54 = vector.multi_reduction <maximumf>, %53, %cst_20 [1] : vector<8x8xf32> to vector<8xf32>
    %55 = vector.shape_cast %54 : vector<8xf32> to vector<8x1xf32>
    %56 = vector.broadcast %55 : vector<8x1xf32> to vector<8x8xf32>
    %57 = arith.subf %53, %56 : vector<8x8xf32>
    %58 = math.exp %57 : vector<8x8xf32>
    %cst_21 = arith.constant dense<0.000000e+00> : vector<8xf32>
    %59 = vector.multi_reduction <add>, %58, %cst_21 [1] : vector<8x8xf32> to vector<8xf32>
    %60 = vector.shape_cast %59 : vector<8xf32> to vector<8x1xf32>
    %61 = tpu.reciprocal %60 : vector<8x1xf32> -> vector<8x1xf32>
    %62 = vector.broadcast %61 : vector<8x1xf32> to vector<8x8xf32>
    %63 = arith.mulf %58, %62 : vector<8x8xf32>
    %cst_22 = arith.constant dense<0.000000e+00> : vector<8x8xf32>
    %64 = tpu.matmul %63, %48, %cst_22 {dimension_numbers = #tpu.dot_dimension_numbers<[1], [0], [0], [1], [0, 0, 1, 1], [], []>} : vector<8x8xf32>, vector<8x8xf32>, vector<8x8xf32> -> vector<8x8xf32>
    %65 = vector.extract_strided_slice %6 {offsets = [0, 24], sizes = [8, 8], strides = [1, 1]} : vector<8x96xf32> to vector<8x8xf32>
    %66 = vector.extract_strided_slice %6 {offsets = [0, 56], sizes = [8, 8], strides = [1, 1]} : vector<8x96xf32> to vector<8x8xf32>
    %67 = vector.extract_strided_slice %6 {offsets = [0, 88], sizes = [8, 8], strides = [1, 1]} : vector<8x96xf32> to vector<8x8xf32>
    %68 = tpu.transpose %66, [1, 0] : vector<8x8xf32> -> vector<8x8xf32>
    %cst_23 = arith.constant dense<0.000000e+00> : vector<8x8xf32>
    %69 = tpu.matmul %65, %68, %cst_23 {dimension_numbers = #tpu.dot_dimension_numbers<[1], [0], [0], [1], [0, 0, 1, 1], [], []>} : vector<8x8xf32>, vector<8x8xf32>, vector<8x8xf32> -> vector<8x8xf32>
    %cst_24 = arith.constant 0.176776692 : f32
    %70 = vector.broadcast %cst_24 : f32 to vector<8x8xf32>
    %71 = arith.mulf %69, %70 : vector<8x8xf32>
    %72 = arith.addf %71, %7 : vector<8x8xf32>
    %cst_25 = arith.constant dense<0xFF800000> : vector<8xf32>
    %73 = vector.multi_reduction <maximumf>, %72, %cst_25 [1] : vector<8x8xf32> to vector<8xf32>
    %74 = vector.shape_cast %73 : vector<8xf32> to vector<8x1xf32>
    %75 = vector.broadcast %74 : vector<8x1xf32> to vector<8x8xf32>
    %76 = arith.subf %72, %75 : vector<8x8xf32>
    %77 = math.exp %76 : vector<8x8xf32>
    %cst_26 = arith.constant dense<0.000000e+00> : vector<8xf32>
    %78 = vector.multi_reduction <add>, %77, %cst_26 [1] : vector<8x8xf32> to vector<8xf32>
    %79 = vector.shape_cast %78 : vector<8xf32> to vector<8x1xf32>
    %80 = tpu.reciprocal %79 : vector<8x1xf32> -> vector<8x1xf32>
    %81 = vector.broadcast %80 : vector<8x1xf32> to vector<8x8xf32>
    %82 = arith.mulf %77, %81 : vector<8x8xf32>
    %cst_27 = arith.constant dense<0.000000e+00> : vector<8x8xf32>
    %83 = tpu.matmul %82, %67, %cst_27 {dimension_numbers = #tpu.dot_dimension_numbers<[1], [0], [0], [1], [0, 0, 1, 1], [], []>} : vector<8x8xf32>, vector<8x8xf32>, vector<8x8xf32> -> vector<8x8xf32>
    %84 = tpu.concatenate %26, %45, %64, %83 in 1 : vector<8x8xf32>, vector<8x8xf32>, vector<8x8xf32>, vector<8x8xf32> -> vector<8x32xf32>
    %c0_28 = arith.constant 0 : index
    %c0_29 = arith.constant 0 : index
    %85 = vector.load %arg5[%c0_28, %c0_29] : memref<32x32xf32, #tpu.memory_space<vmem>>, vector<32x32xf32>
    %cst_30 = arith.constant dense<0.000000e+00> : vector<8x32xf32>
    %86 = tpu.matmul %84, %85, %cst_30 {dimension_numbers = #tpu.dot_dimension_numbers<[1], [0], [0], [1], [0, 0, 1, 1], [], []>} : vector<8x32xf32>, vector<32x32xf32>, vector<8x32xf32> -> vector<8x32xf32>
    %c0_31 = arith.constant 0 : index
    %c0_32 = arith.constant 0 : index
    %87 = vector.load %arg6[%c0_31, %c0_32] : memref<1x32xf32, #tpu.memory_space<vmem>>, vector<1x32xf32>
    %88 = vector.broadcast %87 : vector<1x32xf32> to vector<8x32xf32>
    %89 = arith.addf %86, %88 : vector<8x32xf32>
    %c0_33 = arith.constant 0 : index
    %c0_34 = arith.constant 0 : index
    %c0_35 = arith.constant 0 : index
    %90 = vector.load %arg7[%c0_33, %c0_34, %c0_35] : memref<1x8x32xf32, #tpu.memory_space<vmem>>, vector<1x8x32xf32>
    %91 = vector.shape_cast %90 : vector<1x8x32xf32> to vector<8x32xf32>
    %92 = vector.shape_cast %89 : vector<8x32xf32> to vector<1x8x32xf32>
    tpu.vector_store %arg7[%c0_33, %c0_34, %c0_35], %92 {strides = array<i32>} : memref<1x8x32xf32, #tpu.memory_space<vmem>>, vector<1x8x32xf32>,
    return
  }
  func.func @transform_0(%arg0: i32) -> (i32, i32, i32) {
    %c0_i32 = arith.constant 0 : i32
    %c0_i32_0 = arith.constant 0 : i32
    %c0_i32_1 = arith.constant 0 : i32
    return %arg0, %c0_i32, %c0_i32_0 : i32, i32, i32
  }
  func.func @transform_1(%arg0: i32) -> (i32, i32) {
    %c0_i32 = arith.constant 0 : i32
    %c0_i32_0 = arith.constant 0 : i32
    %c0_i32_1 = arith.constant 0 : i32
    return %c0_i32, %c0_i32_0 : i32, i32
  }
  func.func @transform_2(%arg0: i32) -> (i32, i32) {
    %c0_i32 = arith.constant 0 : i32
    %c0_i32_0 = arith.constant 0 : i32
    %c0_i32_1 = arith.constant 0 : i32
    return %c0_i32, %c0_i32_0 : i32, i32
  }
  func.func @transform_3(%arg0: i32) -> (i32, i32) {
    %c0_i32 = arith.constant 0 : i32
    %c0_i32_0 = arith.constant 0 : i32
    %c0_i32_1 = arith.constant 0 : i32
    return %c0_i32, %c0_i32_0 : i32, i32
  }
  func.func @transform_4(%arg0: i32) -> (i32, i32) {
    %c0_i32 = arith.constant 0 : i32
    %c0_i32_0 = arith.constant 0 : i32
    %c0_i32_1 = arith.constant 0 : i32
    return %c0_i32, %c0_i32_0 : i32, i32
  }
  func.func @transform_5(%arg0: i32) -> (i32, i32) {
    %c0_i32 = arith.constant 0 : i32
    %c0_i32_0 = arith.constant 0 : i32
    %c0_i32_1 = arith.constant 0 : i32
    return %c0_i32, %c0_i32_0 : i32, i32
  }
  func.func @transform_6(%arg0: i32) -> (i32, i32, i32) {
    %c0_i32 = arith.constant 0 : i32
    %c0_i32_0 = arith.constant 0 : i32
    %c0_i32_1 = arith.constant 0 : i32
    return %arg0, %c0_i32, %c0_i32_0 : i32, i32, i32
  }
}

</mosaic_0001>

<llo_original>
// kernel: tpu_custom_call.1
$region0: #{tpu_custom_call.1}
  #allocation0 [shape = 'u32[]', space=smem, size = 0x4, offset = 0x4, fixed_abs, tag = 'smem constant byte address 0x4 - core index']
  #allocation1 [shape = 'u32[72,128]{1,0:T(1,128)}', space=vmem, size = 0x9000, scoped, tag = 'internal scratch']
  %s0 = inlined_call_operand.hbm [shape: f32[6,8,32], index: 0, kind: input, shape index: {}]
  %s1 = inlined_call_operand.hbm [shape: f32[32,96], index: 1, kind: input, shape index: {}]
  %s2 = inlined_call_operand.vmem [shape: f32[1,96], index: 2, kind: input, shape index: {}]
  %s3 = inlined_call_operand.hbm [shape: f32[8,8], index: 3, kind: input, shape index: {}]
  %s4 = inlined_call_operand.hbm [shape: f32[32,32], index: 4, kind: input, shape index: {}]
  %s5 = inlined_call_operand.vmem [shape: f32[1,32], index: 5, kind: input, shape index: {}]
  %s6 = inlined_call_operand.hbm [shape: f32[6,8,32], index: 6, kind: output, shape index: {}]
  %s7 = sld [smem:[#allocation0]]
  $region73: #{tpu_custom_call.1} parent=0
    _
  %s9 = ssub.s32 1, %s7
  %s10 = scalar_select 0, %s9, %s7
  $region1: #{tpu_custom_call.1} parent=0
    #allocation2 [shape = 'u8[8192]{0}', space=vmem, size = 0x2000, scoped, tag = 'input window, operand 0']
    #allocation3 [shape = 's32[2]{0}', space=sflag, size = 0x8, scoped, tag = 'scoped memory for tpu_custom_call.1']
    #allocation4 [shape = 's32[2]{0}', space=sflag, size = 0x8, scoped, tag = 'scoped memory for tpu_custom_call.1']
    #allocation5 [shape = 'u8[16384]{0}', space=vmem, size = 0x4000, scoped, tag = 'input window, operand 1, single buffered']
    #allocation6 [shape = 's32[1]{0}', space=sflag, size = 0x4, scoped, tag = 'scoped memory for tpu_custom_call.1']
    #allocation7 [shape = 'u8[4096]{0}', space=vmem, size = 0x1000, scoped, tag = 'input window, operand 3, single buffered']
    #allocation8 [shape = 'u8[16384]{0}', space=vmem, size = 0x4000, scoped, tag = 'input window, operand 4, single buffered']
    #allocation9 [shape = 's32[1]{0}', space=sflag, size = 0x4, scoped, tag = 'scoped memory for tpu_custom_call.1']
    #allocation10 [shape = 'u8[8192]{0}', space=vmem, size = 0x2000, scoped, tag = 'output window, operand 0']
    %11 = vsyncpa [#allocation3], 0
    %s12 = scalar_lea.sflag [#allocation3], 1
    %13 = vsyncpa %s12, 0
    %14 = vsyncpa [#allocation6], 0
    %15 = vsyncpa [#allocation9], 0
    %16 = vsyncpa [#allocation4], 0
    %s17 = scalar_lea.sflag [#allocation4], 1
    %18 = vsyncpa %s17, 0
    loop: start=0, step=1, limit=8
    $region2: #{tpu_custom_call.1} parent=1 // loop_pre_header
      _
    $region3: #{tpu_custom_call.1} parent=1 // loop_header
      %s20 = sphi 0, %s24
      %p21 = scmp.ge.s32.totalorder %s20, 8
      %s30 = sphi 0, %s32
      %s33 = sphi 0, %s30
      %s34 = sphi 0, %s33
      %s50 = sphi 0, %s34
      %s54 = sphi 0, %s54
      %s56 = sphi 0, %s54
      %s57 = sphi 0, %s56
      %s71 = sphi 0, %s57
      %s75 = sphi 0, %s75
      %s77 = sphi 0, %s75
      %s78 = sphi 0, %s77
      %s92 = sphi 0, %s78
      %s96 = sphi 0, %s96
      %s98 = sphi 0, %s96
      %s99 = sphi 0, %s98
      %s113 = sphi 0, %s99
      %s117 = sphi 0, %s117
      %s119 = sphi 0, %s117
      %s120 = sphi 0, %s119
      %s134 = sphi 0, %s120
      %s138 = sphi 0, %s138
      %s140 = sphi 0, %s138
      %s141 = sphi 0, %s140
      %s155 = sphi 0, %s141
      %s161 = sphi 0, %s163
      %s164 = sphi 0, %s161
      %s165 = sphi 0, %s164
      %s181 = sphi 0, %s165
    $region4: #{tpu_custom_call.1} parent=1 // loop_header_branch
      %23 = sbr.rel (%p21) target = $region8
    $region5: #{tpu_custom_call.1} parent=1 // loop_body
      %s25 = ssub.s32 %s20, 1
      %s26 = ssub.s32 %s20, 2
      %s27 = sadd.s32 %s20, 1
      %s28 = ssub.s32 %s20, %s27
      %p29 = scmp.eq.s32.totalorder %s28, 0
      %s31 = sadd.s32 %s30, 1
      %s32 = scalar_select %p29, %s30, %s31
      %p35 = pneg %p29
      %p36 = scmp.eq.s32.totalorder %s20, 5
      %p37 = por %p35, %p36
      %p38 = scmp.ne.s32.totalorder %s30, %s33
      %p39 = scmp.eq.s32.totalorder %s20, 0
      %p40 = por %p38, %p39
      %p41 = scmp.ne.s32.totalorder %s30, %s33
      %p42 = scmp.eq.s32.totalorder %s25, 5
      %p43 = por %p41, %p42
      %p44 = scmp.ne.s32.totalorder %s33, %s34
      %p45 = scmp.eq.s32.totalorder %s25, 0
      %p46 = por %p44, %p45
      %p47 = scmp.ne.s32.totalorder %s33, %s34
      %p48 = scmp.eq.s32.totalorder %s26, 5
      %p49 = por %p47, %p48
      %p51 = scmp.ne.s32.totalorder %s34, %s50
      %p52 = scmp.eq.s32.totalorder %s26, 0
      %p53 = por %p51, %p52
      %s55 = sadd.s32 %s54, 1
      %p58 = scmp.eq.s32.totalorder %s20, 5
      %p59 = scmp.ne.s32.totalorder %s54, %s56
      %p60 = scmp.eq.s32.totalorder %s20, 0
      %p61 = por %p59, %p60
      %p62 = scmp.ne.s32.totalorder %s54, %s56
      %p63 = scmp.eq.s32.totalorder %s25, 5
      %p64 = por %p62, %p63
      %p65 = scmp.ne.s32.totalorder %s56, %s57
      %p66 = scmp.eq.s32.totalorder %s25, 0
      %p67 = por %p65, %p66
      %p68 = scmp.ne.s32.totalorder %s56, %s57
      %p69 = scmp.eq.s32.totalorder %s26, 5
      %p70 = por %p68, %p69
      %p72 = scmp.ne.s32.totalorder %s57, %s71
      %p73 = scmp.eq.s32.totalorder %s26, 0
      %p74 = por %p72, %p73
      %s76 = sadd.s32 %s75, 1
      %p79 = scmp.eq.s32.totalorder %s20, 5
      %p80 = scmp.ne.s32.totalorder %s75, %s77
      %p81 = scmp.eq.s32.totalorder %s20, 0
      %p82 = por %p80, %p81
      %p83 = scmp.ne.s32.totalorder %s75, %s77
      %p84 = scmp.eq.s32.totalorder %s25, 5
      %p85 = por %p83, %p84
      %p86 = scmp.ne.s32.totalorder %s77, %s78
      %p87 = scmp.eq.s32.totalorder %s25, 0
      %p88 = por %p86, %p87
      %p89 = scmp.ne.s32.totalorder %s77, %s78
      %p90 = scmp.eq.s32.totalorder %s26, 5
      %p91 = por %p89, %p90
      %p93 = scmp.ne.s32.totalorder %s78, %s92
      %p94 = scmp.eq.s32.totalorder %s26, 0
      %p95 = por %p93, %p94
      %s97 = sadd.s32 %s96, 1
      %p100 = scmp.eq.s32.totalorder %s20, 5
      %p101 = scmp.ne.s32.totalorder %s96, %s98
      %p102 = scmp.eq.s32.totalorder %s20, 0
      %p103 = por %p101, %p102
      %p104 = scmp.ne.s32.totalorder %s96, %s98
      %p105 = scmp.eq.s32.totalorder %s25, 5
      %p106 = por %p104, %p105
      %p107 = scmp.ne.s32.totalorder %s98, %s99
      %p108 = scmp.eq.s32.totalorder %s25, 0
      %p109 = por %p107, %p108
      %p110 = scmp.ne.s32.totalorder %s98, %s99
      %p111 = scmp.eq.s32.totalorder %s26, 5
      %p112 = por %p110, %p111
      %p114 = scmp.ne.s32.totalorder %s99, %s113
      %p115 = scmp.eq.s32.totalorder %s26, 0
      %p116 = por %p114, %p115
      %s118 = sadd.s32 %s117, 1
      %p121 = scmp.eq.s32.totalorder %s20, 5
      %p122 = scmp.ne.s32.totalorder %s117, %s119
      %p123 = scmp.eq.s32.totalorder %s20, 0
      %p124 = por %p122, %p123
      %p125 = scmp.ne.s32.totalorder %s117, %s119
      %p126 = scmp.eq.s32.totalorder %s25, 5
      %p127 = por %p125, %p126
      %p128 = scmp.ne.s32.totalorder %s119, %s120
      %p129 = scmp.eq.s32.totalorder %s25, 0
      %p130 = por %p128, %p129
      %p131 = scmp.ne.s32.totalorder %s119, %s120
      %p132 = scmp.eq.s32.totalorder %s26, 5
      %p133 = por %p131, %p132
      %p135 = scmp.ne.s32.totalorder %s120, %s134
      %p136 = scmp.eq.s32.totalorder %s26, 0
      %p137 = por %p135, %p136
      %s139 = sadd.s32 %s138, 1
      %p142 = scmp.eq.s32.totalorder %s20, 5
      %p143 = scmp.ne.s32.totalorder %s138, %s140
      %p144 = scmp.eq.s32.totalorder %s20, 0
      %p145 = por %p143, %p144
      %p146 = scmp.ne.s32.totalorder %s138, %s140
      %p147 = scmp.eq.s32.totalorder %s25, 5
      %p148 = por %p146, %p147
      %p149 = scmp.ne.s32.totalorder %s140, %s141
      %p150 = scmp.eq.s32.totalorder %s25, 0
      %p151 = por %p149, %p150
      %p152 = scmp.ne.s32.totalorder %s140, %s141
      %p153 = scmp.eq.s32.totalorder %s26, 5
      %p154 = por %p152, %p153
      %p156 = scmp.ne.s32.totalorder %s141, %s155
      %p157 = scmp.eq.s32.totalorder %s26, 0
      %p158 = por %p156, %p157
      %s159 = ssub.s32 %s20, %s27
      %p160 = scmp.eq.s32.totalorder %s159, 0
      %s162 = sadd.s32 %s161, 1
      %s163 = scalar_select %p160, %s161, %s162
      %p166 = pneg %p160
      %p167 = scmp.eq.s32.totalorder %s20, 5
      %p168 = por %p166, %p167
      %p169 = scmp.ne.s32.totalorder %s161, %s164
      %p170 = scmp.eq.s32.totalorder %s20, 0
      %p171 = por %p169, %p170
      %p172 = scmp.ne.s32.totalorder %s161, %s164
      %p173 = scmp.eq.s32.totalorder %s25, 5
      %p174 = por %p172, %p173
      %p175 = scmp.ne.s32.totalorder %s164, %s165
      %p176 = scmp.eq.s32.totalorder %s25, 0
      %p177 = por %p175, %p176
      %p178 = scmp.ne.s32.totalorder %s164, %s165
      %p179 = scmp.eq.s32.totalorder %s26, 5
      %p180 = por %p178, %p179
      %p182 = scmp.ne.s32.totalorder %s165, %s181
      %p183 = scmp.eq.s32.totalorder %s26, 0
      %p184 = por %p182, %p183
      %p185 = scmp.le.s32.totalorder 1, %s20
      %p186 = scmp.lt.s32.totalorder %s20, 7
      %p187 = pnand %p185, %p186
      %p188 = pneg %p187
      // Predicated region
      $region9: #{tpu_custom_call.1} parent=5 // pred_check
        _
      $region10: #{tpu_custom_call.1} parent=5 // pred_check_branch
        %190 = sbr.rel (%p187) target = $region12
      $region11: #{tpu_custom_call.1} parent=5 // pred_region
        %s191 = ssub.s32 %s20, 1
        // Predicated region
        $region13: #{tpu_custom_call.1} parent=11 // pred_check
          %p192 = pneg %p67
        $region14: #{tpu_custom_call.1} parent=11 // pred_check_branch
          %194 = sbr.rel (%p192) target = $region16
        $region15: #{tpu_custom_call.1} parent=11 // pred_region
          %196 = vsyncadd [#allocation6], 0
          %s197 = sshll.u32 %s1, 4
          %s198 = int_to_ptr.hbm [resolvable:$true] %s197
          %s199 = sshll.u32 [#allocation5], 4
          %s200 = int_to_ptr.vmem [resolvable:$true] %s199
          %205 = dma.hbm_to_vmem [thread:$0]  %s198, 512, %s200, [#allocation6], 128, 128, 8
        $region16: #{tpu_custom_call.1} parent=11 // pred_fallthru
          _
        // Predicated region
        $region17: #{tpu_custom_call.1} parent=11 // pred_check
          %p206 = pneg %p88
        $region18: #{tpu_custom_call.1} parent=11 // pred_check_branch
          %208 = sbr.rel (%p206) target = $region20
        $region19: #{tpu_custom_call.1} parent=11 // pred_region
          _
        $region20: #{tpu_custom_call.1} parent=11 // pred_fallthru
          _
        // Predicated region
        $region21: #{tpu_custom_call.1} parent=11 // pred_check
          %p209 = pneg %p109
        $region22: #{tpu_custom_call.1} parent=11 // pred_check_branch
          %211 = sbr.rel (%p209) target = $region24
        $region23: #{tpu_custom_call.1} parent=11 // pred_region
          %213 = vsyncadd [#allocation6], 0
          %s215 = sshll.u32 %s3, 4
          %s216 = int_to_ptr.hbm [resolvable:$true] %s215
          %s217 = sshll.u32 [#allocation7], 4
          %s218 = int_to_ptr.vmem [resolvable:$true] %s217
          %220 = dma.hbm_to_vmem [thread:$0]  %s216, 128, %s218, [#allocation6]
        $region24: #{tpu_custom_call.1} parent=11 // pred_fallthru
          _
        // Predicated region
        $region25: #{tpu_custom_call.1} parent=11 // pred_check
          %p221 = pneg %p130
        $region26: #{tpu_custom_call.1} parent=11 // pred_check_branch
          %223 = sbr.rel (%p221) target = $region28
        $region27: #{tpu_custom_call.1} parent=11 // pred_region
          %225 = vsyncadd [#allocation9], 0
          %s226 = sshll.u32 %s4, 4
          %s227 = int_to_ptr.hbm [resolvable:$true] %s226
          %s228 = sshll.u32 [#allocation8], 4
          %s229 = int_to_ptr.vmem [resolvable:$true] %s228
          %234 = dma.hbm_to_vmem [thread:$0]  %s227, 512, %s229, [#allocation9], 128, 128, 8
        $region28: #{tpu_custom_call.1} parent=11 // pred_fallthru
          _
        // Predicated region
        $region29: #{tpu_custom_call.1} parent=11 // pred_check
          %p235 = pneg %p151
        $region30: #{tpu_custom_call.1} parent=11 // pred_check_branch
          %237 = sbr.rel (%p235) target = $region32
        $region31: #{tpu_custom_call.1} parent=11 // pred_region
          _
        $region32: #{tpu_custom_call.1} parent=11 // pred_fallthru
          _
      $region12: #{tpu_custom_call.1} parent=5 // pred_fallthru
        _
      %p238 = scmp.lt.s32.totalorder %s20, 6
      // Predicated region
      $region33: #{tpu_custom_call.1} parent=5 // pred_check
        %p239 = pneg %p238
      $region34: #{tpu_custom_call.1} parent=5 // pred_check_branch
        %241 = sbr.rel (%p239) target = $region36
      $region35: #{tpu_custom_call.1} parent=5 // pred_region
        // Predicated region
        $region37: #{tpu_custom_call.1} parent=35 // pred_check
          %p242 = pneg %p40
        $region38: #{tpu_custom_call.1} parent=35 // pred_check_branch
          %244 = sbr.rel (%p242) target = $region40
        $region39: #{tpu_custom_call.1} parent=35 // pred_region
          %s245 = sand.u32 %s30, 1
          %s246 = scalar_lea.sflag [#allocation3], %s245
          %s247 = sand.u32 %s30, 1
          %s248 = smul.addr %s247, 8
          %s249 = scalar_lea.vmem [#allocation2], %s248
          %251 = vsyncadd %s246, 0
          %s252 = smul.addr %s20, 8
          %s253 = scalar_lea.hbm %s0, %s252
          %s255 = sshll.u32 %s253, 4
          %s256 = int_to_ptr.hbm [resolvable:$true] %s255
          %s257 = sshll.u32 %s249, 4
          %s258 = int_to_ptr.vmem [resolvable:$true] %s257
          %260 = dma.hbm_to_vmem [thread:$0]  %s256, 128, %s258, %s246
        $region40: #{tpu_custom_call.1} parent=35 // pred_fallthru
          _
      $region36: #{tpu_custom_call.1} parent=5 // pred_fallthru
        _
      %p261 = scmp.le.s32.totalorder 1, %s20
      %p262 = scmp.lt.s32.totalorder %s20, 7
      %p263 = pnand %p261, %p262
      %p264 = pneg %p263
      // Predicated region
      $region41: #{tpu_custom_call.1} parent=5 // pred_check
        _
      $region42: #{tpu_custom_call.1} parent=5 // pred_check_branch
        %266 = sbr.rel (%p263) target = $region44
      $region43: #{tpu_custom_call.1} parent=5 // pred_region
        %s267 = ssub.s32 %s20, 1
        %s268 = sand.u32 %s33, 1
        %s269 = scalar_lea.sflag [#allocation3], %s268
        %s270 = sand.u32 %s33, 1
        %s271 = smul.addr %s270, 8
        %s272 = scalar_lea.vmem [#allocation2], %s271
        // Predicated region
        $region45: #{tpu_custom_call.1} parent=43 // pred_check
          %p273 = pneg %p46
        $region46: #{tpu_custom_call.1} parent=43 // pred_check_branch
          %275 = sbr.rel (%p273) target = $region48
        $region47: #{tpu_custom_call.1} parent=43 // pred_region
          %277 = dma.done %s269, 128
        $region48: #{tpu_custom_call.1} parent=43 // pred_fallthru
          _
        // Predicated region
        $region49: #{tpu_custom_call.1} parent=43 // pred_check
          %p278 = pneg %p67
        $region50: #{tpu_custom_call.1} parent=43 // pred_check_branch
          %280 = sbr.rel (%p278) target = $region52
        $region51: #{tpu_custom_call.1} parent=43 // pred_region
          %282 = dma.done [#allocation6], 512
        $region52: #{tpu_custom_call.1} parent=43 // pred_fallthru
          _
        // Predicated region
        $region53: #{tpu_custom_call.1} parent=43 // pred_check
          %p283 = pneg %p109
        $region54: #{tpu_custom_call.1} parent=43 // pred_check_branch
          %285 = sbr.rel (%p283) target = $region56
        $region55: #{tpu_custom_call.1} parent=43 // pred_region
          %287 = dma.done [#allocation6], 128
        $region56: #{tpu_custom_call.1} parent=43 // pred_fallthru
          _
        // Predicated region
        $region57: #{tpu_custom_call.1} parent=43 // pred_check
          %p288 = pneg %p130
        $region58: #{tpu_custom_call.1} parent=43 // pred_check_branch
          %290 = sbr.rel (%p288) target = $region60
        $region59: #{tpu_custom_call.1} parent=43 // pred_region
          %292 = dma.done [#allocation9], 512
        $region60: #{tpu_custom_call.1} parent=43 // pred_fallthru
          _
        %s293 = sand.u32 %s33, 1
        %s294 = scalar_lea.sflag [#allocation3], %s293
        %s295 = sand.u32 %s33, 1
        %s296 = smul.addr %s295, 8
        %s297 = scalar_lea.vmem [#allocation2], %s296
        %p298 = pneg %p46
        %p299 = pneg %p43
        %p300 = pneg %p67
        %p301 = pneg %p64
        %p302 = pneg %p88
        %p303 = pneg %p85
        %p304 = pneg %p109
        %p305 = pneg %p106
        %p306 = pneg %p130
        %p307 = pneg %p127
        %p308 = pneg %p151
        %p309 = pneg %p148
        %p310 = pneg %p177
        %p311 = pneg %p174
        %s312 = sand.u32 %s164, 1
        %s313 = scalar_lea.sflag [#allocation4], %s312
        %s314 = sand.u32 %s164, 1
        %s315 = smul.addr %s314, 8
        %s316 = scalar_lea.vmem [#allocation10], %s315
        %v317 = vld [vmem:[%s272] sm:$0xff]
        %v318 = vld [vmem:[#allocation5] sm:$0xff]
        %v319 = vld [vmem:[#allocation5 + $0x8] sm:$0xff]
        %v320 = vld [vmem:[#allocation5 + $0x10] sm:$0xff]
        %v321 = vld [vmem:[#allocation5 + $0x18] sm:$0xff]
        %v322 = vld [vmem:[%s2] sm:$0x1]
        %v324 = vperm.slane %v322, 0
        %vm326 = vcmask 261120
        %v328 = vsel %vm326, %v317, 0
        %330 = vmatpush.msra.mxu0 0.0
        %331 = vmatpush.msra.mxu0 0.0
        %332 = vmatpush.msra.mxu0 0.0
        %333 = vmatpush.msra.mxu0 0.0
        %334 = vmatpush.msra.mxu0 0.0
        %335 = vmatpush.msra.mxu0 0.0
        %336 = vmatpush.msra.mxu0 0.0
        %337 = vmatpush.msra.mxu0 0.0
        %338 = vmatpush.msra.mxu0 0.0
        %339 = vmatpush.msra.mxu0 0.0
        %340 = vmatpush.msra.mxu0 0.0
        %341 = vmatpush.msra.mxu0 0.0
        %342 = vmatpush.msra.mxu0 %v321
        %343 = vmatpush.msra.mxu0 %v320
        %344 = vmatpush.msra.mxu0 %v319
        %345 = vmatpush.msra.mxu0 %v318
        %346 = vmatmul.f32.gmra.mxu0 %v328
        %v347 = vpop.f32.mrf.mxu0
        %v348 = vadd.f32 %v324, %v347
        %349 = vdwg.mxu0
        %v350 = vld [vmem:[#allocation7] sm:$0xff]
        %352 = vrot.lane.b32.xlu0 %v348, 96
        %v353 = vpop.permute.xlu0 %352
        %vm354 = vcmask 64512
        %v355 = vsel %vm354, %v348, 0
        %v357 = vsel %vm354, %v353, 0
        %359 = vmatpush.xpose.msra.mxu0 0.0
        %360 = vmatpush.xpose.msra.mxu0 0.0
        %361 = vmatpush.xpose.msra.mxu0 0.0
        %362 = vmatpush.xpose.msra.mxu0 0.0
        %363 = vmatpush.xpose.msra.mxu0 0.0
        %364 = vmatpush.xpose.msra.mxu0 0.0
        %365 = vmatpush.xpose.msra.mxu0 0.0
        %366 = vmatpush.xpose.msra.mxu0 0.0
        %367 = vmatpush.xpose.msra.mxu0 0.0
        %368 = vmatpush.xpose.msra.mxu0 0.0
        %369 = vmatpush.xpose.msra.mxu0 0.0
        %370 = vmatpush.xpose.msra.mxu0 0.0
        %371 = vmatpush.xpose.msra.mxu0 0.0
        %372 = vmatpush.xpose.msra.mxu0 0.0
        %373 = vmatpush.xpose.msra.mxu0 0.0
        %374 = vmatpush.xpose.msra.mxu0 %v357
        %375 = vmatmul.f32.gmra.mxu0 %v355
        %v376 = vpop.f32.mrf.mxu0
        %v377 = vadd.f32 0.0, %v376
        %378 = vdwg.mxu0
        %v379 = vmul.f32 %v377, 0.17677669
        %v380 = vadd.f32 %v379, %v350
        %v381 = vsel %vm354, %v380, -inf
        %382 = vmax.xlane.f32.xlu0 %v381
        %v383 = vpop.xlane.xlu0 %382
        %v384 = vsub.f32 %v380, %v383
        %v385 = vmul.f32 %v384, 1.442695
        %v386 = vpow.pop %v385
        %v387 = vsel %vm354, %v386, 0.0
        %388 = vadd.xlane.f32.xlu0 %v387
        %v389 = vpop.xlane.xlu0 %388
        %v390 = vrcp.pop %v389
        %v391 = vmul.f32 %v389, %v390
        %v392 = vsub.f32 1.0, %v391
        %v393 = vmul.f32 %v390, %v392
        %v394 = vadd.f32 %v390, %v393
        %vm395 = vweird.f32 %v389
        %vm396 = vweird.f32 %v390
        %vm397 = vmor %vm395, %vm396
        %v398 = vsel %vm397, %v390, %v394
        %v399 = vand.u32 2147483647, %v389
        %vm400 = vcmp.eq.f32.partialorder %v399, 8.507059e+37
        %v401 = vand.u32 %v389, 2147483648
        %v402 = vor.u32 1.1754944e-38, %v401
        %v403 = vsel %vm400, %v402, %v398
        %v404 = vmul.f32 %v386, %v403
        %405 = vrot.lane.b32.xlu0 %v348, 64
        %v406 = vpop.permute.xlu0 %405
        %v409 = vsel %vm354, %v404, 0
        %411 = vmatpush.msra.mxu0 0.0
        %412 = vmatpush.msra.mxu0 0.0
        %413 = vmatpush.msra.mxu0 0.0
        %414 = vmatpush.msra.mxu0 0.0
        %415 = vmatpush.msra.mxu0 0.0
        %416 = vmatpush.msra.mxu0 0.0
        %417 = vmatpush.msra.mxu0 0.0
        %418 = vmatpush.msra.mxu0 0.0
        %419 = vmatpush.msra.mxu0 0.0
        %420 = vmatpush.msra.mxu0 0.0
        %421 = vmatpush.msra.mxu0 0.0
        %422 = vmatpush.msra.mxu0 0.0
        %423 = vmatpush.msra.mxu0 0.0
        %424 = vmatpush.msra.mxu0 0.0
        %425 = vmatpush.msra.mxu0 0.0
        %426 = vmatpush.msra.mxu0 %v406
        %427 = vmatmul.f32.gmra.mxu0 %v409
        %v428 = vpop.f32.mrf.mxu0
        %v429 = vadd.f32 0.0, %v428
        %430 = vdwg.mxu0
        %431 = vrot.lane.b32.xlu0 %v348, 120
        %v432 = vpop.permute.xlu0 %431
        %433 = vrot.lane.b32.xlu0 %v348, 88
        %v434 = vpop.permute.xlu0 %433
        %v435 = vsel %vm354, %v432, 0
        %v437 = vsel %vm354, %v434, 0
        %439 = vmatpush.xpose.msra.mxu0 0.0
        %440 = vmatpush.xpose.msra.mxu0 0.0
        %441 = vmatpush.xpose.msra.mxu0 0.0
        %442 = vmatpush.xpose.msra.mxu0 0.0
        %443 = vmatpush.xpose.msra.mxu0 0.0
        %444 = vmatpush.xpose.msra.mxu0 0.0
        %445 = vmatpush.xpose.msra.mxu0 0.0
        %446 = vmatpush.xpose.msra.mxu0 0.0
        %447 = vmatpush.xpose.msra.mxu0 0.0
        %448 = vmatpush.xpose.msra.mxu0 0.0
        %449 = vmatpush.xpose.msra.mxu0 0.0
        %450 = vmatpush.xpose.msra.mxu0 0.0
        %451 = vmatpush.xpose.msra.mxu0 0.0
        %452 = vmatpush.xpose.msra.mxu0 0.0
        %453 = vmatpush.xpose.msra.mxu0 0.0
        %454 = vmatpush.xpose.msra.mxu0 %v437
        %455 = vmatmul.f32.gmra.mxu0 %v435
        %v456 = vpop.f32.mrf.mxu0
        %v457 = vadd.f32 0.0, %v456
        %458 = vdwg.mxu0
        %v459 = vmul.f32 %v457, 0.17677669
        %v460 = vadd.f32 %v459, %v350
        %v461 = vsel %vm354, %v460, -inf
        %462 = vmax.xlane.f32.xlu0 %v461
        %v463 = vpop.xlane.xlu0 %462
        %v464 = vsub.f32 %v460, %v463
        %v465 = vmul.f32 %v464, 1.442695
        %v466 = vpow.pop %v465
        %v467 = vsel %vm354, %v466, 0.0
        %468 = vadd.xlane.f32.xlu0 %v467
        %v469 = vpop.xlane.xlu0 %468
        %v470 = vrcp.pop %v469
        %v471 = vmul.f32 %v469, %v470
        %v472 = vsub.f32 1.0, %v471
        %v473 = vmul.f32 %v470, %v472
        %v474 = vadd.f32 %v470, %v473
        %vm475 = vweird.f32 %v469
        %vm476 = vweird.f32 %v470
        %vm477 = vmor %vm475, %vm476
        %v478 = vsel %vm477, %v470, %v474
        %v479 = vand.u32 2147483647, %v469
        %vm480 = vcmp.eq.f32.partialorder %v479, 8.507059e+37
        %v481 = vand.u32 %v469, 2147483648
        %v482 = vor.u32 1.1754944e-38, %v481
        %v483 = vsel %vm480, %v482, %v478
        %v484 = vmul.f32 %v466, %v483
        %485 = vrot.lane.b32.xlu0 %v348, 56
        %v486 = vpop.permute.xlu0 %485
        %v489 = vsel %vm354, %v484, 0
        %491 = vmatpush.msra.mxu0 0.0
        %492 = vmatpush.msra.mxu0 0.0
        %493 = vmatpush.msra.mxu0 0.0
        %494 = vmatpush.msra.mxu0 0.0
        %495 = vmatpush.msra.mxu0 0.0
        %496 = vmatpush.msra.mxu0 0.0
        %497 = vmatpush.msra.mxu0 0.0
        %498 = vmatpush.msra.mxu0 0.0
        %499 = vmatpush.msra.mxu0 0.0
        %500 = vmatpush.msra.mxu0 0.0
        %501 = vmatpush.msra.mxu0 0.0
        %502 = vmatpush.msra.mxu0 0.0
        %503 = vmatpush.msra.mxu0 0.0
        %504 = vmatpush.msra.mxu0 0.0
        %505 = vmatpush.msra.mxu0 0.0
        %506 = vmatpush.msra.mxu0 %v486
        %507 = vmatmul.f32.gmra.mxu0 %v489
        %v508 = vpop.f32.mrf.mxu0
        %v509 = vadd.f32 0.0, %v508
        %510 = vdwg.mxu0
        %511 = vrot.lane.b32.xlu0 %v348, 112
        %v512 = vpop.permute.xlu0 %511
        %513 = vrot.lane.b32.xlu0 %v348, 80
        %v514 = vpop.permute.xlu0 %513
        %v515 = vsel %vm354, %v512, 0
        %v517 = vsel %vm354, %v514, 0
        %519 = vmatpush.xpose.msra.mxu0 0.0
        %520 = vmatpush.xpose.msra.mxu0 0.0
        %521 = vmatpush.xpose.msra.mxu0 0.0
        %522 = vmatpush.xpose.msra.mxu0 0.0
        %523 = vmatpush.xpose.msra.mxu0 0.0
        %524 = vmatpush.xpose.msra.mxu0 0.0
        %525 = vmatpush.xpose.msra.mxu0 0.0
        %526 = vmatpush.xpose.msra.mxu0 0.0
        %527 = vmatpush.xpose.msra.mxu0 0.0
        %528 = vmatpush.xpose.msra.mxu0 0.0
        %529 = vmatpush.xpose.msra.mxu0 0.0
        %530 = vmatpush.xpose.msra.mxu0 0.0
        %531 = vmatpush.xpose.msra.mxu0 0.0
        %532 = vmatpush.xpose.msra.mxu0 0.0
        %533 = vmatpush.xpose.msra.mxu0 0.0
        %534 = vmatpush.xpose.msra.mxu0 %v517
        %535 = vmatmul.f32.gmra.mxu0 %v515
        %v536 = vpop.f32.mrf.mxu0
        %v537 = vadd.f32 0.0, %v536
        %538 = vdwg.mxu0
        %v539 = vmul.f32 %v537, 0.17677669
        %v540 = vadd.f32 %v539, %v350
        %v541 = vsel %vm354, %v540, -inf
        %542 = vmax.xlane.f32.xlu0 %v541
        %v543 = vpop.xlane.xlu0 %542
        %v544 = vsub.f32 %v540, %v543
        %v545 = vmul.f32 %v544, 1.442695
        %v546 = vpow.pop %v545
        %v547 = vsel %vm354, %v546, 0.0
        %548 = vadd.xlane.f32.xlu0 %v547
        %v549 = vpop.xlane.xlu0 %548
        %v550 = vrcp.pop %v549
        %v551 = vmul.f32 %v549, %v550
        %v552 = vsub.f32 1.0, %v551
        %v553 = vmul.f32 %v550, %v552
        %v554 = vadd.f32 %v550, %v553
        %vm555 = vweird.f32 %v549
        %vm556 = vweird.f32 %v550
        %vm557 = vmor %vm555, %vm556
        %v558 = vsel %vm557, %v550, %v554
        %v559 = vand.u32 2147483647, %v549
        %vm560 = vcmp.eq.f32.partialorder %v559, 8.507059e+37
        %v561 = vand.u32 %v549, 2147483648
        %v562 = vor.u32 1.1754944e-38, %v561
        %v563 = vsel %vm560, %v562, %v558
        %v564 = vmul.f32 %v546, %v563
        %565 = vrot.lane.b32.xlu0 %v348, 48
        %v566 = vpop.permute.xlu0 %565
        %v569 = vsel %vm354, %v564, 0
        %571 = vmatpush.msra.mxu0 0.0
        %572 = vmatpush.msra.mxu0 0.0
        %573 = vmatpush.msra.mxu0 0.0
        %574 = vmatpush.msra.mxu0 0.0
        %575 = vmatpush.msra.mxu0 0.0
        %576 = vmatpush.msra.mxu0 0.0
        %577 = vmatpush.msra.mxu0 0.0
        %578 = vmatpush.msra.mxu0 0.0
        %579 = vmatpush.msra.mxu0 0.0
        %580 = vmatpush.msra.mxu0 0.0
        %581 = vmatpush.msra.mxu0 0.0
        %582 = vmatpush.msra.mxu0 0.0
        %583 = vmatpush.msra.mxu0 0.0
        %584 = vmatpush.msra.mxu0 0.0
        %585 = vmatpush.msra.mxu0 0.0
        %586 = vmatpush.msra.mxu0 %v566
        %587 = vmatmul.f32.gmra.mxu0 %v569
        %v588 = vpop.f32.mrf.mxu0
        %v589 = vadd.f32 0.0, %v588
        %590 = vdwg.mxu0
        %591 = vrot.lane.b32.xlu0 %v348, 104
        %v592 = vpop.permute.xlu0 %591
        %593 = vrot.lane.b32.xlu0 %v348, 72
        %v594 = vpop.permute.xlu0 %593
        %v595 = vsel %vm354, %v592, 0
        %v597 = vsel %vm354, %v594, 0
        %599 = vmatpush.xpose.msra.mxu0 0.0
        %600 = vmatpush.xpose.msra.mxu0 0.0
        %601 = vmatpush.xpose.msra.mxu0 0.0
        %602 = vmatpush.xpose.msra.mxu0 0.0
        %603 = vmatpush.xpose.msra.mxu0 0.0
        %604 = vmatpush.xpose.msra.mxu0 0.0
        %605 = vmatpush.xpose.msra.mxu0 0.0
        %606 = vmatpush.xpose.msra.mxu0 0.0
        %607 = vmatpush.xpose.msra.mxu0 0.0
        %608 = vmatpush.xpose.msra.mxu0 0.0
        %609 = vmatpush.xpose.msra.mxu0 0.0
        %610 = vmatpush.xpose.msra.mxu0 0.0
        %611 = vmatpush.xpose.msra.mxu0 0.0
        %612 = vmatpush.xpose.msra.mxu0 0.0
        %613 = vmatpush.xpose.msra.mxu0 0.0
        %614 = vmatpush.xpose.msra.mxu0 %v597
        %615 = vmatmul.f32.gmra.mxu0 %v595
        %v616 = vpop.f32.mrf.mxu0
        %v617 = vadd.f32 0.0, %v616
        %618 = vdwg.mxu0
        %v619 = vmul.f32 %v617, 0.17677669
        %v620 = vadd.f32 %v619, %v350
        %v621 = vsel %vm354, %v620, -inf
        %622 = vmax.xlane.f32.xlu0 %v621
        %v623 = vpop.xlane.xlu0 %622
        %v624 = vsub.f32 %v620, %v623
        %v625 = vmul.f32 %v624, 1.442695
        %v626 = vpow.pop %v625
        %v627 = vsel %vm354, %v626, 0.0
        %628 = vadd.xlane.f32.xlu0 %v627
        %v629 = vpop.xlane.xlu0 %628
        %v630 = vrcp.pop %v629
        %v631 = vmul.f32 %v629, %v630
        %v632 = vsub.f32 1.0, %v631
        %v633 = vmul.f32 %v630, %v632
        %v634 = vadd.f32 %v630, %v633
        %vm635 = vweird.f32 %v629
        %vm636 = vweird.f32 %v630
        %vm637 = vmor %vm635, %vm636
        %v638 = vsel %vm637, %v630, %v634
        %v639 = vand.u32 2147483647, %v629
        %vm640 = vcmp.eq.f32.partialorder %v639, 8.507059e+37
        %v641 = vand.u32 %v629, 2147483648
        %v642 = vor.u32 1.1754944e-38, %v641
        %v643 = vsel %vm640, %v642, %v638
        %v644 = vmul.f32 %v626, %v643
        %645 = vrot.lane.b32.xlu0 %v348, 40
        %v646 = vpop.permute.xlu0 %645
        %v649 = vsel %vm354, %v644, 0
        %651 = vmatpush.msra.mxu0 0.0
        %652 = vmatpush.msra.mxu0 0.0
        %653 = vmatpush.msra.mxu0 0.0
        %654 = vmatpush.msra.mxu0 0.0
        %655 = vmatpush.msra.mxu0 0.0
        %656 = vmatpush.msra.mxu0 0.0
        %657 = vmatpush.msra.mxu0 0.0
        %658 = vmatpush.msra.mxu0 0.0
        %659 = vmatpush.msra.mxu0 0.0
        %660 = vmatpush.msra.mxu0 0.0
        %661 = vmatpush.msra.mxu0 0.0
        %662 = vmatpush.msra.mxu0 0.0
        %663 = vmatpush.msra.mxu0 0.0
        %664 = vmatpush.msra.mxu0 0.0
        %665 = vmatpush.msra.mxu0 0.0
        %666 = vmatpush.msra.mxu0 %v646
        %667 = vmatmul.f32.gmra.mxu0 %v649
        %v668 = vpop.f32.mrf.mxu0
        %v669 = vadd.f32 0.0, %v668
        %670 = vdwg.mxu0
        %672 = vrot.lane.b32.xlu0 %v509, 8
        %v673 = vpop.permute.xlu0 %672
        %676 = vrot.lane.b32.xlu0 %v589, 16
        %v677 = vpop.permute.xlu0 %676
        %680 = vrot.lane.b32.xlu0 %v669, 24
        %v681 = vpop.permute.xlu0 %680
        %v683 = vsel %vm354, %v429, %v673
        %vm684 = vcmask 130048
        %v685 = vsel %vm684, %v683, %v677
        %vm686 = vcmask 195584
        %v687 = vsel %vm686, %v685, %v681
        %v688 = vld [vmem:[#allocation8] sm:$0xff]
        %v689 = vld [vmem:[#allocation8 + $0x8] sm:$0xff]
        %v690 = vld [vmem:[#allocation8 + $0x10] sm:$0xff]
        %v691 = vld [vmem:[#allocation8 + $0x18] sm:$0xff]
        %v692 = vld [vmem:[%s5] sm:$0x1]
        %v694 = vperm.slane %v692, 0
        %v697 = vsel %vm326, %v687, 0
        %699 = vmatpush.msra.mxu0 0.0
        %700 = vmatpush.msra.mxu0 0.0
        %701 = vmatpush.msra.mxu0 0.0
        %702 = vmatpush.msra.mxu0 0.0
        %703 = vmatpush.msra.mxu0 0.0
        %704 = vmatpush.msra.mxu0 0.0
        %705 = vmatpush.msra.mxu0 0.0
        %706 = vmatpush.msra.mxu0 0.0
        %707 = vmatpush.msra.mxu0 0.0
        %708 = vmatpush.msra.mxu0 0.0
        %709 = vmatpush.msra.mxu0 0.0
        %710 = vmatpush.msra.mxu0 0.0
        %711 = vmatpush.msra.mxu0 %v691
        %712 = vmatpush.msra.mxu0 %v690
        %713 = vmatpush.msra.mxu0 %v689
        %714 = vmatpush.msra.mxu0 %v688
        %715 = vmatmul.f32.gmra.mxu0 %v697
        %v716 = vpop.f32.mrf.mxu0
        %v717 = vadd.f32 %v694, %v716
        %718 = vdwg.mxu0
        %719 = vst.msk [vmem:[%s316] sm:$0xff] %vm326, %v717
        %s720 = sand.u32 %s164, 1
        %s721 = scalar_lea.sflag [#allocation4], %s720
        %s722 = sand.u32 %s164, 1
        %s723 = smul.addr %s722, 8
        %s724 = scalar_lea.vmem [#allocation10], %s723
        // Predicated region
        $region61: #{tpu_custom_call.1} parent=43 // pred_check
          %p725 = pneg %p174
        $region62: #{tpu_custom_call.1} parent=43 // pred_check_branch
          %727 = sbr.rel (%p725) target = $region64
        $region63: #{tpu_custom_call.1} parent=43 // pred_region
          %729 = vsyncadd %s721, 0
          %s730 = smul.addr %s25, 8
          %s731 = scalar_lea.hbm %s6, %s730
          %s733 = sshll.u32 %s724, 4
          %s734 = int_to_ptr.vmem [resolvable:$true] %s733
          %s735 = sshll.u32 %s731, 4
          %s736 = int_to_ptr.hbm [resolvable:$true] %s735
          %738 = dma.vmem_to_hbm [thread:$0]  %s734, 128, %s736, %s721
        $region64: #{tpu_custom_call.1} parent=43 // pred_fallthru
          _
      $region44: #{tpu_custom_call.1} parent=5 // pred_fallthru
        _
      %p739 = scmp.le.s32.totalorder 2, %s20
      // Predicated region
      $region65: #{tpu_custom_call.1} parent=5 // pred_check
        %p740 = pneg %p739
      $region66: #{tpu_custom_call.1} parent=5 // pred_check_branch
        %742 = sbr.rel (%p740) target = $region68
      $region67: #{tpu_custom_call.1} parent=5 // pred_region
        %s743 = ssub.s32 %s20, 2
        // Predicated region
        $region69: #{tpu_custom_call.1} parent=67 // pred_check
          %p744 = pneg %p180
        $region70: #{tpu_custom_call.1} parent=67 // pred_check_branch
          %746 = sbr.rel (%p744) target = $region72
        $region71: #{tpu_custom_call.1} parent=67 // pred_region
          %s747 = sand.u32 %s165, 1
          %s748 = scalar_lea.sflag [#allocation4], %s747
          %s749 = sand.u32 %s165, 1
          %s750 = smul.addr %s749, 8
          %s751 = scalar_lea.vmem [#allocation10], %s750
          %753 = dma.done %s748, 128
        $region72: #{tpu_custom_call.1} parent=67 // pred_fallthru
          _
      $region68: #{tpu_custom_call.1} parent=5 // pred_fallthru
        _
    $region6: #{tpu_custom_call.1} parent=1 // loop_footer
      %s24 = sadd.s32 1, %s20
    $region7: #{tpu_custom_call.1} parent=1 // loop_footer_branch
      %19 = sbr.rel target = $region3
    $region8: #{tpu_custom_call.1} parent=1 // loop_exit
      _
    %754 = vsyncpa [#allocation3], 1
    %s755 = scalar_lea.sflag [#allocation3], 1
    %756 = vsyncpa %s755, 1
    %757 = vsyncpa [#allocation6], 1
    %758 = vsyncpa [#allocation9], 1
    %759 = vsyncpa [#allocation4], 1
    %s760 = scalar_lea.sflag [#allocation4], 1
    %761 = vsyncpa %s760, 1

</llo_original>
